<compile_context>
chip_gen: v7x
topology: tpu7x:2x2x1
jax: 0.10.0
libtpu: 0.0.40
codegen_flags: <defaults>
</compile_context>

<pallas_src>
import functools

import jax
import jax.numpy as jnp
from jax.experimental import pallas as pl
from jax.experimental.pallas import tpu as pltpu


_EPS = 1e-12  # guards rsqrt against a zero / denormal weight column


def _wnfc_single_pass_kernel(e_ref, w_ref, o_ref, inv_ref, *, s, eps):
    """tk == E: whole contraction dim resident; grid = (C//tn, B//tm)."""
    i = pl.program_id(1)               # inner (batch-tile) index
    w = w_ref[...]                     # native dtype (bf16 or f32) — no upcast copy

    @pl.when(i == 0)
    def _():
        # Per-column sum of squares of W via the MXU (ones-row @ w*w), f32
        # accumulation; cached in VMEM for all batch tiles of this column tile.
        ones = jnp.ones((1, w.shape[0]), w.dtype)
        ssq = jnp.dot(ones, w * w, preferred_element_type=jnp.float32)
        inv_ref[...] = jax.lax.rsqrt(jnp.maximum(ssq, eps))   # EUP rsqrt

    e = e_ref[...].astype(w.dtype)     # small (tm, E) cast -> clean MXU pass
    acc = jnp.dot(e, w, preferred_element_type=jnp.float32)
    cos = jnp.clip(acc * inv_ref[...], -1.0, 1.0)
    o_ref[...] = (cos * s).astype(o_ref.dtype)


def _wnfc_ktiled_kernel(e_ref, w_ref, o_ref, acc_ref, nrm_ref, *, s, eps):
    """Fallback for very large E; grid = (C//tn, B//tm, E//tk), k innermost."""
    i = pl.program_id(1)
    k = pl.program_id(2)
    nk = pl.num_programs(2)
    w = w_ref[...]

    @pl.when(k == 0)
    def _():
        acc_ref[...] = jnp.zeros_like(acc_ref)

    @pl.when(jnp.logical_and(i == 0, k == 0))
    def _():
        nrm_ref[...] = jnp.zeros_like(nrm_ref)

    e = e_ref[...].astype(w.dtype)
    acc_ref[...] += jnp.dot(e, w, preferred_element_type=jnp.float32)

    @pl.when(i == 0)   # only the first batch tile accumulates the column ssq
    def _():
        ones = jnp.ones((1, w.shape[0]), w.dtype)
        nrm_ref[...] += jnp.dot(ones, w * w, preferred_element_type=jnp.float32)

    @pl.when(jnp.logical_and(i == 0, k == nk - 1))
    def _():   # convert accumulated ssq -> inv_norm once; reused for i > 0
        nrm_ref[...] = jax.lax.rsqrt(jnp.maximum(nrm_ref[...], eps))

    @pl.when(k == nk - 1)
    def _():
        cos = jnp.clip(acc_ref[...] * nrm_ref[...], -1.0, 1.0)
        o_ref[...] = (cos * s).astype(o_ref.dtype)


def _round_up(x, m):
    return -(-x // m) * m


def _vmem_budget():
    """Per-generation (tile budget, vmem_limit_bytes)."""
    cap = 64 * 1024 * 1024
    try:
        cap = int(pltpu.get_tpu_info().vmem_capacity_bytes)
    except Exception:
        pass  # interpret mode / older jax: stay conservative (64 MiB assumption)
    if cap >= 128 * 1024 * 1024:            # v5e / v6e: 128 MiB physical VMEM
        return 56 * 1024 * 1024, 100 * 1024 * 1024
    return 22 * 1024 * 1024, 44 * 1024 * 1024   # v7x: 64 MiB physical VMEM


def _pick_tn_tk(tm, E, C, w_item, e_item, o_item, budget):
    """Pick (tn, tk); tk == E means a single K pass (2-D grid)."""
    c128 = _round_up(C, 128)
    # Keep >= 2 column tiles when possible so v7x megacore can split the j axis.
    tn_cap = max(c128 // 2 if c128 >= 256 else c128, 128)
    tn_cands = [t for t in (4096, 2048, 1024, 512, 256, 128) if t <= tn_cap]

    def single_pass_bytes(tn):
        return (2 * E * tn * w_item        # W tile (double-buffered)
                + 2 * tm * E * e_item      # emb tile (double-buffered)
                + 2 * tm * tn * o_item     # out tile (double-buffered)
                + E * tn * w_item          # in-kernel w*w temporary
                + tm * E * w_item          # emb dtype-cast temporary
                + 2 * tm * tn * 4          # f32 acc / cos temporaries
                + tn * 4)                  # inv_norm scratch

    for tn in tn_cands:
        if single_pass_bytes(tn) <= budget:
            return tn, E

    # K-tiled fallback for very large E (needs E % tk == 0, tk multiple of 128).
    def ktiled_bytes(tn, tk):
        return (2 * tk * tn * w_item + 2 * tm * tk * e_item
                + 2 * tm * tn * o_item + tk * tn * w_item + tm * tk * w_item
                + 3 * tm * tn * 4 + tn * 4)

    for tn in tn_cands:
        for tk in (2048, 1024, 512, 256, 128):
            if E % tk == 0 and ktiled_bytes(tn, tk) <= budget:
                return tn, tk

    # Last resort (degenerate shapes): smallest lane-dense tile; vmem_limit is
    # set well above the budget so this still has headroom to compile.
    return 128, E


def wnfc_forward(embeddings, kernel, *, s=16.0, weight_dtype=jnp.bfloat16,
                 tm=None, tn=None, tk=None):
    """embeddings (B, E), kernel (E, C) -> clamp(emb @ W/||W||_col, -1, 1) * s."""
    B, E = embeddings.shape
    E2, C = kernel.shape
    assert E == E2, "embedding_size mismatch"

    out_dtype = embeddings.dtype
    w = kernel if weight_dtype is None else kernel.astype(weight_dtype)
    w_item = jnp.dtype(w.dtype).itemsize
    e_item = jnp.dtype(embeddings.dtype).itemsize
    o_item = jnp.dtype(out_dtype).itemsize

    budget, vmem_limit = _vmem_budget()

    if tm is None:
        tm = B if B <= 256 else 256    # cap row tile; MXU-friendly on v6e/v7x
    if tn is None or tk is None:
        auto_tn, auto_tk = _pick_tn_tk(tm, E, C, w_item, e_item, o_item, budget)
        tn = auto_tn if tn is None else tn
        tk = auto_tk if tk is None else tk
    single_pass = (tk == E)
    if not single_pass:
        assert E % tk == 0, "K tile must divide embedding_size"

    # Zero-pad batch / class dims up to tile multiples: lane-dense stores, and
    # padded columns get ssq == 0 -> output 0 -> sliced away below.  (In a real
    # model, pad/cast W once outside the step instead of per call.)
    B_pad = _round_up(B, tm)
    C_pad = _round_up(C, tn)
    if B_pad != B:
        embeddings = jnp.pad(embeddings, ((0, B_pad - B), (0, 0)))
    if C_pad != C:
        w = jnp.pad(w, ((0, 0), (0, C_pad - C)))

    if single_pass:
        out = pl.pallas_call(
            functools.partial(_wnfc_single_pass_kernel, s=s, eps=_EPS),
            out_shape=jax.ShapeDtypeStruct((B_pad, C_pad), out_dtype),
            grid_spec=pltpu.PrefetchScalarGridSpec(
                num_scalar_prefetch=0,
                grid=(C_pad // tn, B_pad // tm),          # j outer, i inner
                in_specs=[
                    pl.BlockSpec((tm, E), lambda j, i: (i, 0)),   # embeddings
                    pl.BlockSpec((E, tn), lambda j, i: (0, j)),   # weight (streamed once)
                ],
                out_specs=pl.BlockSpec((tm, tn), lambda j, i: (i, j)),
                scratch_shapes=[pltpu.VMEM((1, tn), jnp.float32)],  # inv_norm cache
            ),
            compiler_params=pltpu.CompilerParams(
                dimension_semantics=("parallel", "arbitrary"),
                vmem_limit_bytes=vmem_limit,
            ),
        )(embeddings, w)
    else:
        out = pl.pallas_call(
            functools.partial(_wnfc_ktiled_kernel, s=s, eps=_EPS),
            out_shape=jax.ShapeDtypeStruct((B_pad, C_pad), out_dtype),
            grid_spec=pltpu.PrefetchScalarGridSpec(
                num_scalar_prefetch=0,
                grid=(C_pad // tn, B_pad // tm, E // tk),
                in_specs=[
                    pl.BlockSpec((tm, tk), lambda j, i, k: (i, k)),   # embeddings
                    pl.BlockSpec((tk, tn), lambda j, i, k: (k, j)),   # weight
                ],
                out_specs=pl.BlockSpec((tm, tn), lambda j, i, k: (i, j)),
                scratch_shapes=[
                    pltpu.VMEM((tm, tn), jnp.float32),   # matmul accumulator
                    pltpu.VMEM((1, tn), jnp.float32),    # ssq -> inv_norm cache
                ],
            ),
            compiler_params=pltpu.CompilerParams(
                dimension_semantics=("parallel", "arbitrary", "arbitrary"),
                vmem_limit_bytes=vmem_limit,
            ),
        )(embeddings, w)

    if B_pad != B or C_pad != C:
        out = out[:B, :C]
    return out


def init_wnfc_kernel(key, embedding_size, classnum):
    """Mimics: Tensor(E, C).uniform_(-1, 1).renorm_(2, 1, 1e-5).mul_(1e5)."""
    w = jax.random.uniform(key, (embedding_size, classnum),
                           dtype=jnp.float32, minval=-1.0, maxval=1.0)
    col_norm = jnp.sqrt(jnp.sum(w * w, axis=0, keepdims=True))
    scale = jnp.where(col_norm > 1e-5, 1e-5 / col_norm, 1.0)
    return w * scale * 1e5


def wnfc_reference(embeddings, kernel, s=16.0):
    col_norm = jnp.sqrt(jnp.sum(kernel * kernel, axis=0, keepdims=True))
    kn = kernel / col_norm
    cos = jnp.clip(embeddings @ kn, -1.0, 1.0)
    return cos * s


if __name__ == "__main__":
    # Small shapes consistent with the module; C deliberately not a multiple of
    # 128 to exercise the lane-dense padding path.
    B, E, C = 8, 256, 500
    key = jax.random.PRNGKey(0)
    k_emb, k_w = jax.random.split(key)

    embeddings = jax.random.normal(k_emb, (B, E), dtype=jnp.float32)
    weight = init_wnfc_kernel(k_w, E, C)

    ref_f32 = wnfc_reference(embeddings, weight, s=16.0)

    # 1) Default fast path: bf16-streamed weights.  Compare against a reference
    #    that applies the same bf16 rounding to its inputs.
    out_bf16 = jax.block_until_ready(wnfc_forward(embeddings, weight, s=16.0))
    assert out_bf16.shape == (B, C)
    e_bf = embeddings.astype(jnp.bfloat16).astype(jnp.float32)
    w_bf = weight.astype(jnp.bfloat16).astype(jnp.float32)
    ref_bf16 = wnfc_reference(e_bf, w_bf, s=16.0)
    assert jnp.allclose(out_bf16, ref_bf16, atol=1e-1, rtol=1e-2), "bf16 path mismatch"

    # 2) Exact-f32 path matches the module reference tightly.
    out_f32 = jax.block_until_ready(
        wnfc_forward(embeddings, weight, s=16.0, weight_dtype=jnp.float32))
    assert out_f32.shape == (B, C)
    assert jnp.allclose(out_f32, ref_f32, atol=1e-4, rtol=1e-4), "f32 path mismatch"

    # 3) Forced K-tiled fallback path (f32) for coverage.
    out_kt = jax.block_until_ready(
        wnfc_forward(embeddings, weight, s=16.0, weight_dtype=jnp.float32,
                     tn=128, tk=128))
    assert jnp.allclose(out_kt, ref_f32, atol=1e-4, rtol=1e-4), "k-tiled mismatch"

    print("KERNEL_OK")
</pallas_src>

<mosaic_0001>
module attributes {stable_mosaic.version = 11 : i64} {
  func.func @_wnfc_single_pass_kernel(%arg0: i32, %arg1: i32, %arg2: memref<8x256xf32, #tpu.memory_space<vmem>>, %arg3: memref<256x256xbf16, #tpu.memory_space<vmem>>, %arg4: memref<8x256xf32, #tpu.memory_space<vmem>>, %arg5: memref<1x256xf32, #tpu.memory_space<vmem>>) attributes {dimension_semantics = [#tpu.dimension_semantics<parallel>, #tpu.dimension_semantics<arbitrary>], iteration_bounds = array<i64: 2, 1>, scalar_prefetch = 0 : i64, scratch_operands = 1 : i64, tpu.core_type = #tpu.core_type<tc>, window_params = [{transform_indices = @transform_0, window_bounds = array<i64: 8, 256>}, {transform_indices = @transform_1, window_bounds = array<i64: 256, 256>}, {transform_indices = @transform_2, window_bounds = array<i64: 8, 256>}]} {
    %c0 = arith.constant 0 : index
    %c0_0 = arith.constant 0 : index
    %0 = vector.load %arg3[%c0, %c0_0] : memref<256x256xbf16, #tpu.memory_space<vmem>>, vector<256x256xbf16>
    %c0_i32 = arith.constant 0 : i32
    %1 = arith.cmpi eq, %arg1, %c0_i32 : i32
    %2 = arith.extui %1 : i1 to i32
    %c0_i32_1 = arith.constant 0 : i32
    %3 = arith.cmpi ne, %2, %c0_i32_1 : i32
    scf.if %3 {
      %cst_11 = arith.constant 1.000000e+00 : bf16
      %17 = vector.broadcast %cst_11 : bf16 to vector<1x256xbf16>
      %18 = arith.mulf %0, %0 : vector<256x256xbf16>
      %cst_12 = arith.constant dense<0.000000e+00> : vector<1x256xf32>
      %19 = tpu.matmul %17, %18, %cst_12 {dimension_numbers = #tpu.dot_dimension_numbers<[1], [0], [0], [1], [0, 0, 1, 1], [], []>} : vector<1x256xbf16>, vector<256x256xbf16>, vector<1x256xf32> -> vector<1x256xf32>
      %cst_13 = arith.constant 9.99999996E-13 : f32
      %20 = vector.broadcast %cst_13 : f32 to vector<1x256xf32>
      %21 = arith.maximumf %19, %20 : vector<1x256xf32>
      %22 = math.rsqrt %21 : vector<1x256xf32>
      %c0_14 = arith.constant 0 : index
      %c0_15 = arith.constant 0 : index
      %23 = vector.load %arg5[%c0_14, %c0_15] : memref<1x256xf32, #tpu.memory_space<vmem>>, vector<1x256xf32>
      tpu.vector_store %arg5[%c0_14, %c0_15], %22 {strides = array<i32>} : memref<1x256xf32, #tpu.memory_space<vmem>>, vector<1x256xf32>,
    } else {
    }
    %c0_2 = arith.constant 0 : index
    %c0_3 = arith.constant 0 : index
    %4 = vector.load %arg2[%c0_2, %c0_3] : memref<8x256xf32, #tpu.memory_space<vmem>>, vector<8x256xf32>
    %5 = arith.truncf %4 : vector<8x256xf32> to vector<8x256xbf16>
    %cst = arith.constant dense<0.000000e+00> : vector<8x256xf32>
    %6 = tpu.matmul %5, %0, %cst {dimension_numbers = #tpu.dot_dimension_numbers<[1], [0], [0], [1], [0, 0, 1, 1], [], []>} : vector<8x256xbf16>, vector<256x256xbf16>, vector<8x256xf32> -> vector<8x256xf32>
    %c0_4 = arith.constant 0 : index
    %c0_5 = arith.constant 0 : index
    %7 = vector.load %arg5[%c0_4, %c0_5] : memref<1x256xf32, #tpu.memory_space<vmem>>, vector<1x256xf32>
    %8 = vector.broadcast %7 : vector<1x256xf32> to vector<8x256xf32>
    %9 = arith.mulf %6, %8 : vector<8x256xf32>
    %cst_6 = arith.constant -1.000000e+00 : f32
    %cst_7 = arith.constant 1.000000e+00 : f32
    %10 = vector.broadcast %cst_6 : f32 to vector<8x256xf32>
    %11 = arith.maximumf %10, %9 : vector<8x256xf32>
    %12 = vector.broadcast %cst_7 : f32 to vector<8x256xf32>
    %13 = arith.minimumf %12, %11 : vector<8x256xf32>
    %cst_8 = arith.constant 1.600000e+01 : f32
    %14 = vector.broadcast %cst_8 : f32 to vector<8x256xf32>
    %15 = arith.mulf %13, %14 : vector<8x256xf32>
    %c0_9 = arith.constant 0 : index
    %c0_10 = arith.constant 0 : index
    %16 = vector.load %arg4[%c0_9, %c0_10] : memref<8x256xf32, #tpu.memory_space<vmem>>, vector<8x256xf32>
    tpu.vector_store %arg4[%c0_9, %c0_10], %15 {strides = array<i32>} : memref<8x256xf32, #tpu.memory_space<vmem>>, vector<8x256xf32>,
    return
  }
  func.func @transform_0(%arg0: i32, %arg1: i32) -> (i32, i32) {
    %c0_i32 = arith.constant 0 : i32
    %c0_i32_0 = arith.constant 0 : i32
    return %arg1, %c0_i32 : i32, i32
  }
  func.func @transform_1(%arg0: i32, %arg1: i32) -> (i32, i32) {
    %c0_i32 = arith.constant 0 : i32
    %c0_i32_0 = arith.constant 0 : i32
    return %c0_i32, %arg0 : i32, i32
  }
  func.func @transform_2(%arg0: i32, %arg1: i32) -> (i32, i32) {
    %c0_i32 = arith.constant 0 : i32
    return %arg1, %arg0 : i32, i32
  }
}

</mosaic_0001>

<llo_original>
// kernel: tpu_custom_call.1
$region0: #{tpu_custom_call.1}
  #allocation0 [shape = 'u32[]', space=smem, size = 0x4, offset = 0x4, fixed_abs, tag = 'smem constant byte address 0x4 - core index']
  #allocation1 [shape = 'u32[144,128]{1,0:T(1,128)}', space=vmem, size = 0x12000, scoped, tag = 'internal scratch']
  #allocation2 [shape = 'f32[1,256]{1,0:T(1,128)}', space=vmem, size = 0x400, scoped, tag = 'scratch operand']
  %s0 = inlined_call_operand.hbm [shape: f32[8,256], index: 0, kind: input, shape index: {}]
  %s1 = inlined_call_operand.hbm [shape: bf16[256,512], index: 1, kind: input, shape index: {}]
  %s2 = inlined_call_operand.hbm [shape: f32[8,512], index: 2, kind: output, shape index: {}]
  %s3 = sld [smem:[#allocation0]]
  $region53: #{tpu_custom_call.1} parent=0
    _
  %s5 = ssub.s32 1, %s3
  %s6 = scalar_select 0, %s5, %s3
  $region1: #{tpu_custom_call.1} parent=0
    #allocation3 [shape = 'u8[8192]{0}', space=vmem, size = 0x2000, scoped, tag = 'input window, operand 0, single buffered']
    #allocation4 [shape = 's32[2]{0}', space=sflag, size = 0x8, scoped, tag = 'scoped memory for tpu_custom_call.1']
    #allocation5 [shape = 's32[2]{0}', space=sflag, size = 0x8, scoped, tag = 'scoped memory for tpu_custom_call.1']
    #allocation6 [shape = 'u8[262144]{0}', space=vmem, size = 0x40000, scoped, tag = 'input window, operand 1']
    #allocation7 [shape = 's32[2]{0}', space=sflag, size = 0x8, scoped, tag = 'scoped memory for tpu_custom_call.1']
    #allocation8 [shape = 'u8[16384]{0}', space=vmem, size = 0x4000, scoped, tag = 'output window, operand 0']
    %7 = vsyncpa [#allocation4], 0
    %8 = vsyncpa [#allocation7], 0
    %s9 = scalar_lea.sflag [#allocation7], 1
    %10 = vsyncpa %s9, 0
    %11 = vsyncpa [#allocation5], 0
    %s12 = scalar_lea.sflag [#allocation5], 1
    %13 = vsyncpa %s12, 0
    loop: start=0, step=1, limit=4
    $region2: #{tpu_custom_call.1} parent=1 // loop_pre_header
      _
    $region3: #{tpu_custom_call.1} parent=1 // loop_header
      %s15 = sphi 0, %s19
      %p16 = scmp.ge.s32.totalorder %s15, 4
      %s22 = sphi 0, %s34
      %s23 = sphi 0, %s30
      %s24 = sphi 0, %s22
      %s25 = sphi 0, %s23
      %s26 = sphi 0, %s24
      %s27 = sphi 0, %s25
      %s37 = sphi 0, %s39
      %s40 = sphi 0, %s37
      %s41 = sphi 0, %s40
      %s57 = sphi 0, %s41
      %s63 = sphi 0, %s65
      %s66 = sphi 0, %s63
      %s67 = sphi 0, %s66
      %s83 = sphi 0, %s67
      %s91 = sphi 0, %s93
      %s94 = sphi 0, %s91
      %s95 = sphi 0, %s94
      %s111 = sphi 0, %s95
    $region4: #{tpu_custom_call.1} parent=1 // loop_header_branch
      %18 = sbr.rel (%p16) target = $region8
    $region5: #{tpu_custom_call.1} parent=1 // loop_body
      %s20 = ssub.s32 %s15, 1
      %s21 = ssub.s32 %s15, 2
      %s28 = sadd.s32 1, %s23
      %p29 = scmp.ge.s32.totalorder %s28, 1
      %s30 = scalar_select %p29, 0, %s28
      %s31 = sadd.s32 1, %s22
      %s32 = scalar_select %p29, %s31, %s22
      %p33 = scmp.ge.s32.totalorder %s32, 2
      %s34 = scalar_select %p33, 0, %s32
      %s35 = ssub.s32 %s23, %s30
      %p36 = scmp.eq.s32.totalorder %s35, 0
      %s38 = sadd.s32 %s37, 1
      %s39 = scalar_select %p36, %s37, %s38
      %p42 = pneg %p36
      %p43 = scmp.eq.s32.totalorder %s15, 1
      %p44 = por %p42, %p43
      %p45 = scmp.ne.s32.totalorder %s37, %s40
      %p46 = scmp.eq.s32.totalorder %s15, 0
      %p47 = por %p45, %p46
      %p48 = scmp.ne.s32.totalorder %s37, %s40
      %p49 = scmp.eq.s32.totalorder %s20, 1
      %p50 = por %p48, %p49
      %p51 = scmp.ne.s32.totalorder %s40, %s41
      %p52 = scmp.eq.s32.totalorder %s20, 0
      %p53 = por %p51, %p52
      %p54 = scmp.ne.s32.totalorder %s40, %s41
      %p55 = scmp.eq.s32.totalorder %s21, 1
      %p56 = por %p54, %p55
      %p58 = scmp.ne.s32.totalorder %s41, %s57
      %p59 = scmp.eq.s32.totalorder %s21, 0
      %p60 = por %p58, %p59
      %s61 = ssub.s32 %s22, %s34
      %p62 = scmp.eq.s32.totalorder %s61, 0
      %s64 = sadd.s32 %s63, 1
      %s65 = scalar_select %p62, %s63, %s64
      %p68 = pneg %p62
      %p69 = scmp.eq.s32.totalorder %s15, 1
      %p70 = por %p68, %p69
      %p71 = scmp.ne.s32.totalorder %s63, %s66
      %p72 = scmp.eq.s32.totalorder %s15, 0
      %p73 = por %p71, %p72
      %p74 = scmp.ne.s32.totalorder %s63, %s66
      %p75 = scmp.eq.s32.totalorder %s20, 1
      %p76 = por %p74, %p75
      %p77 = scmp.ne.s32.totalorder %s66, %s67
      %p78 = scmp.eq.s32.totalorder %s20, 0
      %p79 = por %p77, %p78
      %p80 = scmp.ne.s32.totalorder %s66, %s67
      %p81 = scmp.eq.s32.totalorder %s21, 1
      %p82 = por %p80, %p81
      %p84 = scmp.ne.s32.totalorder %s67, %s83
      %p85 = scmp.eq.s32.totalorder %s21, 0
      %p86 = por %p84, %p85
      %s87 = ssub.s32 %s23, %s30
      %s88 = ssub.s32 %s22, %s34
      %s89 = sor.u32 %s87, %s88
      %p90 = scmp.eq.s32.totalorder %s89, 0
      %s92 = sadd.s32 %s91, 1
      %s93 = scalar_select %p90, %s91, %s92
      %p96 = pneg %p90
      %p97 = scmp.eq.s32.totalorder %s15, 1
      %p98 = por %p96, %p97
      %p99 = scmp.ne.s32.totalorder %s91, %s94
      %p100 = scmp.eq.s32.totalorder %s15, 0
      %p101 = por %p99, %p100
      %p102 = scmp.ne.s32.totalorder %s91, %s94
      %p103 = scmp.eq.s32.totalorder %s20, 1
      %p104 = por %p102, %p103
      %p105 = scmp.ne.s32.totalorder %s94, %s95
      %p106 = scmp.eq.s32.totalorder %s20, 0
      %p107 = por %p105, %p106
      %p108 = scmp.ne.s32.totalorder %s94, %s95
      %p109 = scmp.eq.s32.totalorder %s21, 1
      %p110 = por %p108, %p109
      %p112 = scmp.ne.s32.totalorder %s95, %s111
      %p113 = scmp.eq.s32.totalorder %s21, 0
      %p114 = por %p112, %p113
      %p115 = scmp.le.s32.totalorder 1, %s15
      %p116 = scmp.lt.s32.totalorder %s15, 3
      %p117 = pnand %p115, %p116
      %p118 = pneg %p117
      // Predicated region
      $region9: #{tpu_custom_call.1} parent=5 // pred_check
        _
      $region10: #{tpu_custom_call.1} parent=5 // pred_check_branch
        %120 = sbr.rel (%p117) target = $region12
      $region11: #{tpu_custom_call.1} parent=5 // pred_region
        %s121 = ssub.s32 %s15, 1
        // Predicated region
        $region13: #{tpu_custom_call.1} parent=11 // pred_check
          %p122 = pneg %p53
        $region14: #{tpu_custom_call.1} parent=11 // pred_check_branch
          %124 = sbr.rel (%p122) target = $region16
        $region15: #{tpu_custom_call.1} parent=11 // pred_region
          %s126 = ssub.s32 256, 256
          %127 = vsyncadd [#allocation4], %s126
          %s128 = smul.addr %s25, 2
          %s129 = smul.addr %s128, 128
          %s130 = scalar_lea.hbm %s0, %s129
          %s132 = sshll.u32 [#allocation3], 4
          %s133 = int_to_ptr.vmem [resolvable:$true] %s132
          %135 = dma.hbm_to_vmem [thread:$0]  %s130, 256, %s133, [#allocation4]
        $region16: #{tpu_custom_call.1} parent=11 // pred_fallthru
          _
      $region12: #{tpu_custom_call.1} parent=5 // pred_fallthru
        _
      %p136 = scmp.lt.s32.totalorder %s15, 2
      // Predicated region
      $region17: #{tpu_custom_call.1} parent=5 // pred_check
        %p137 = pneg %p136
      $region18: #{tpu_custom_call.1} parent=5 // pred_check_branch
        %139 = sbr.rel (%p137) target = $region20
      $region19: #{tpu_custom_call.1} parent=5 // pred_region
        // Predicated region
        $region21: #{tpu_custom_call.1} parent=19 // pred_check
          %p140 = pneg %p73
        $region22: #{tpu_custom_call.1} parent=19 // pred_check_branch
          %142 = sbr.rel (%p140) target = $region24
        $region23: #{tpu_custom_call.1} parent=19 // pred_region
          %s143 = sand.u32 %s63, 1
          %s144 = scalar_lea.sflag [#allocation7], %s143
          %s145 = sand.u32 %s63, 1
          %s146 = smul.addr %s145, 256
          %s147 = scalar_lea.vmem [#allocation6], %s146
          %s148 = smul.u32 2, %s22
          %s150 = ssub.s32 4096, 4096
          %151 = vsyncadd %s144, %s150
          %s152 = smul.addr %s148, 64
          %s153 = scalar_lea.hbm %s1, %s152
          %s154 = sshll.u32 %s147, 4
          %s155 = int_to_ptr.vmem [resolvable:$true] %s154
          %160 = dma.hbm_to_vmem [thread:$0]  %s153, 4096, %s155, %s144, 256, 128, 8
        $region24: #{tpu_custom_call.1} parent=19 // pred_fallthru
          _
      $region20: #{tpu_custom_call.1} parent=5 // pred_fallthru
        _
      %p161 = scmp.le.s32.totalorder 1, %s15
      %p162 = scmp.lt.s32.totalorder %s15, 3
      %p163 = pnand %p161, %p162
      %p164 = pneg %p163
      // Predicated region
      $region25: #{tpu_custom_call.1} parent=5 // pred_check
        _
      $region26: #{tpu_custom_call.1} parent=5 // pred_check_branch
        %166 = sbr.rel (%p163) target = $region28
      $region27: #{tpu_custom_call.1} parent=5 // pred_region
        %s167 = ssub.s32 %s15, 1
        // Predicated region
        $region29: #{tpu_custom_call.1} parent=27 // pred_check
          %p168 = pneg %p53
        $region30: #{tpu_custom_call.1} parent=27 // pred_check_branch
          %170 = sbr.rel (%p168) target = $region32
        $region31: #{tpu_custom_call.1} parent=27 // pred_region
          %171 = dma.done [#allocation4], 256
        $region32: #{tpu_custom_call.1} parent=27 // pred_fallthru
          _
        %s172 = sand.u32 %s66, 1
        %s173 = scalar_lea.sflag [#allocation7], %s172
        %s174 = sand.u32 %s66, 1
        %s175 = smul.addr %s174, 256
        %s176 = scalar_lea.vmem [#allocation6], %s175
        // Predicated region
        $region33: #{tpu_custom_call.1} parent=27 // pred_check
          %p177 = pneg %p79
        $region34: #{tpu_custom_call.1} parent=27 // pred_check_branch
          %179 = sbr.rel (%p177) target = $region36
        $region35: #{tpu_custom_call.1} parent=27 // pred_region
          %180 = dma.done %s173, 4096
        $region36: #{tpu_custom_call.1} parent=27 // pred_fallthru
          _
        %p181 = pneg %p53
        %p182 = pneg %p50
        %s183 = sand.u32 %s66, 1
        %s184 = scalar_lea.sflag [#allocation7], %s183
        %s185 = sand.u32 %s66, 1
        %s186 = smul.addr %s185, 256
        %s187 = scalar_lea.vmem [#allocation6], %s186
        %p188 = pneg %p79
        %p189 = pneg %p76
        %p190 = pneg %p107
        %p191 = pneg %p104
        %s192 = sand.u32 %s94, 1
        %s193 = scalar_lea.sflag [#allocation5], %s192
        %s194 = sand.u32 %s94, 1
        %s195 = smul.addr %s194, 16
        %s196 = scalar_lea.vmem [#allocation8], %s195
        %s197 = smul.u32 2, %s24
        %s198 = smul.u32 2, %s24
        %v200 = vld [vmem:[%s176] sm:$0xff]
        %v201 = vld [vmem:[%s176 + $0x8] sm:$0xff]
        %v202 = vld [vmem:[%s176 + $0x10] sm:$0xff]
        %v203 = vld [vmem:[%s176 + $0x18] sm:$0xff]
        %v204 = vld [vmem:[%s176 + $0x20] sm:$0xff]
        %v205 = vld [vmem:[%s176 + $0x28] sm:$0xff]
        %v206 = vld [vmem:[%s176 + $0x30] sm:$0xff]
        %v207 = vld [vmem:[%s176 + $0x38] sm:$0xff]
        %v208 = vld [vmem:[%s176 + $0x40] sm:$0xff]
        %v209 = vld [vmem:[%s176 + $0x48] sm:$0xff]
        %v210 = vld [vmem:[%s176 + $0x50] sm:$0xff]
        %v211 = vld [vmem:[%s176 + $0x58] sm:$0xff]
        %v212 = vld [vmem:[%s176 + $0x60] sm:$0xff]
        %v213 = vld [vmem:[%s176 + $0x68] sm:$0xff]
        %v214 = vld [vmem:[%s176 + $0x70] sm:$0xff]
        %v215 = vld [vmem:[%s176 + $0x78] sm:$0xff]
        %v216 = vld [vmem:[%s176 + $0x80] sm:$0xff]
        %v217 = vld [vmem:[%s176 + $0x88] sm:$0xff]
        %v218 = vld [vmem:[%s176 + $0x90] sm:$0xff]
        %v219 = vld [vmem:[%s176 + $0x98] sm:$0xff]
        %v220 = vld [vmem:[%s176 + $0xa0] sm:$0xff]
        %v221 = vld [vmem:[%s176 + $0xa8] sm:$0xff]
        %v222 = vld [vmem:[%s176 + $0xb0] sm:$0xff]
        %v223 = vld [vmem:[%s176 + $0xb8] sm:$0xff]
        %v224 = vld [vmem:[%s176 + $0xc0] sm:$0xff]
        %v225 = vld [vmem:[%s176 + $0xc8] sm:$0xff]
        %v226 = vld [vmem:[%s176 + $0xd0] sm:$0xff]
        %v227 = vld [vmem:[%s176 + $0xd8] sm:$0xff]
        %v228 = vld [vmem:[%s176 + $0xe0] sm:$0xff]
        %v229 = vld [vmem:[%s176 + $0xe8] sm:$0xff]
        %v230 = vld [vmem:[%s176 + $0xf0] sm:$0xff]
        %v231 = vld [vmem:[%s176 + $0xf8] sm:$0xff]
        %p232 = scmp.eq.s32.totalorder %s25, 0
        // Predicated region
        $region37: #{tpu_custom_call.1} parent=27 // pred_check
          %p233 = pneg %p232
        $region38: #{tpu_custom_call.1} parent=27 // pred_check_branch
          %235 = sbr.rel (%p233) target = $region40
        $region39: #{tpu_custom_call.1} parent=27 // pred_region
          %v236 = vmul.bf16 %v200, %v200
          %v237 = vmul.bf16 %v201, %v201
          %v238 = vmul.bf16 %v202, %v202
          %v239 = vmul.bf16 %v203, %v203
          %v240 = vmul.bf16 %v204, %v204
          %v241 = vmul.bf16 %v205, %v205
          %v242 = vmul.bf16 %v206, %v206
          %v243 = vmul.bf16 %v207, %v207
          %v244 = vmul.bf16 %v208, %v208
          %v245 = vmul.bf16 %v209, %v209
          %v246 = vmul.bf16 %v210, %v210
          %v247 = vmul.bf16 %v211, %v211
          %v248 = vmul.bf16 %v212, %v212
          %v249 = vmul.bf16 %v213, %v213
          %v250 = vmul.bf16 %v214, %v214
          %v251 = vmul.bf16 %v215, %v215
          %v252 = vmul.bf16 %v216, %v216
          %v253 = vmul.bf16 %v217, %v217
          %v254 = vmul.bf16 %v218, %v218
          %v255 = vmul.bf16 %v219, %v219
          %v256 = vmul.bf16 %v220, %v220
          %v257 = vmul.bf16 %v221, %v221
          %v258 = vmul.bf16 %v222, %v222
          %v259 = vmul.bf16 %v223, %v223
          %v260 = vmul.bf16 %v224, %v224
          %v261 = vmul.bf16 %v225, %v225
          %v262 = vmul.bf16 %v226, %v226
          %v263 = vmul.bf16 %v227, %v227
          %v264 = vmul.bf16 %v228, %v228
          %v265 = vmul.bf16 %v229, %v229
          %v266 = vmul.bf16 %v230, %v230
          %v267 = vmul.bf16 %v231, %v231
          %v300 = vunpack.c.l.b16 %v236
          %v301 = vunpack.c.h.b16 %v236
          %v302 = vunpack.c.l.b16 %v237
          %v303 = vunpack.c.h.b16 %v237
          %v304 = vunpack.c.l.b16 %v238
          %v305 = vunpack.c.h.b16 %v238
          %v306 = vunpack.c.l.b16 %v239
          %v307 = vunpack.c.h.b16 %v239
          %v308 = vunpack.c.l.b16 %v240
          %v309 = vunpack.c.h.b16 %v240
          %v310 = vunpack.c.l.b16 %v241
          %v311 = vunpack.c.h.b16 %v241
          %v312 = vunpack.c.l.b16 %v242
          %v313 = vunpack.c.h.b16 %v242
          %v314 = vunpack.c.l.b16 %v243
          %v315 = vunpack.c.h.b16 %v243
          %v316 = vunpack.c.l.b16 %v244
          %v317 = vunpack.c.h.b16 %v244
          %v318 = vunpack.c.l.b16 %v245
          %v319 = vunpack.c.h.b16 %v245
          %v320 = vunpack.c.l.b16 %v246
          %v321 = vunpack.c.h.b16 %v246
          %v322 = vunpack.c.l.b16 %v247
          %v323 = vunpack.c.h.b16 %v247
          %v324 = vunpack.c.l.b16 %v248
          %v325 = vunpack.c.h.b16 %v248
          %v326 = vunpack.c.l.b16 %v249
          %v327 = vunpack.c.h.b16 %v249
          %v328 = vunpack.c.l.b16 %v250
          %v329 = vunpack.c.h.b16 %v250
          %v330 = vunpack.c.l.b16 %v251
          %v331 = vunpack.c.h.b16 %v251
          %v332 = vunpack.c.l.b16 %v252
          %v333 = vunpack.c.h.b16 %v252
          %v334 = vunpack.c.l.b16 %v253
          %v335 = vunpack.c.h.b16 %v253
          %v336 = vunpack.c.l.b16 %v254
          %v337 = vunpack.c.h.b16 %v254
          %v338 = vunpack.c.l.b16 %v255
          %v339 = vunpack.c.h.b16 %v255
          %v340 = vunpack.c.l.b16 %v256
          %v341 = vunpack.c.h.b16 %v256
          %v342 = vunpack.c.l.b16 %v257
          %v343 = vunpack.c.h.b16 %v257
          %v344 = vunpack.c.l.b16 %v258
          %v345 = vunpack.c.h.b16 %v258
          %v346 = vunpack.c.l.b16 %v259
          %v347 = vunpack.c.h.b16 %v259
          %v348 = vunpack.c.l.b16 %v260
          %v349 = vunpack.c.h.b16 %v260
          %v350 = vunpack.c.l.b16 %v261
          %v351 = vunpack.c.h.b16 %v261
          %v352 = vunpack.c.l.b16 %v262
          %v353 = vunpack.c.h.b16 %v262
          %v354 = vunpack.c.l.b16 %v263
          %v355 = vunpack.c.h.b16 %v263
          %v356 = vunpack.c.l.b16 %v264
          %v357 = vunpack.c.h.b16 %v264
          %v358 = vunpack.c.l.b16 %v265
          %v359 = vunpack.c.h.b16 %v265
          %v360 = vunpack.c.l.b16 %v266
          %v361 = vunpack.c.h.b16 %v266
          %v362 = vunpack.c.l.b16 %v267
          %v363 = vunpack.c.h.b16 %v267
          %v364 = vpack.c.b16 %v302, %v300
          %v365 = vpack.c.b16 %v303, %v301
          %v366 = vpack.c.b16 %v306, %v304
          %v367 = vpack.c.b16 %v307, %v305
          %v368 = vpack.c.b16 %v310, %v308
          %v369 = vpack.c.b16 %v311, %v309
          %v370 = vpack.c.b16 %v314, %v312
          %v371 = vpack.c.b16 %v315, %v313
          %v372 = vpack.c.b16 %v318, %v316
          %v373 = vpack.c.b16 %v319, %v317
          %v374 = vpack.c.b16 %v322, %v320
          %v375 = vpack.c.b16 %v323, %v321
          %v376 = vpack.c.b16 %v326, %v324
          %v377 = vpack.c.b16 %v327, %v325
          %v378 = vpack.c.b16 %v330, %v328
          %v379 = vpack.c.b16 %v331, %v329
          %v380 = vpack.c.b16 %v334, %v332
          %v381 = vpack.c.b16 %v335, %v333
          %v382 = vpack.c.b16 %v338, %v336
          %v383 = vpack.c.b16 %v339, %v337
          %v384 = vpack.c.b16 %v342, %v340
          %v385 = vpack.c.b16 %v343, %v341
          %v386 = vpack.c.b16 %v346, %v344
          %v387 = vpack.c.b16 %v347, %v345
          %v388 = vpack.c.b16 %v350, %v348
          %v389 = vpack.c.b16 %v351, %v349
          %v390 = vpack.c.b16 %v354, %v352
          %v391 = vpack.c.b16 %v355, %v353
          %v392 = vpack.c.b16 %v358, %v356
          %v393 = vpack.c.b16 %v359, %v357
          %v394 = vpack.c.b16 %v362, %v360
          %v395 = vpack.c.b16 %v363, %v361
          %428 = vmatprep.subr.bf16.mxu0 %v365
          %429 = vmatpush1.bf16.msra.mxu0 %v364
          %430 = vmatprep.subr.bf16.mxu0 %v367
          %431 = vmatpush1.bf16.msra.mxu0 %v366
          %432 = vmatprep.subr.bf16.mxu0 %v369
          %433 = vmatpush1.bf16.msra.mxu0 %v368
          %434 = vmatprep.subr.bf16.mxu0 %v371
          %435 = vmatpush1.bf16.msra.mxu0 %v370
          %436 = vmatprep.subr.bf16.mxu0 %v373
          %437 = vmatpush1.bf16.msra.mxu0 %v372
          %438 = vmatprep.subr.bf16.mxu0 %v375
          %439 = vmatpush1.bf16.msra.mxu0 %v374
          %440 = vmatprep.subr.bf16.mxu0 %v377
          %441 = vmatpush1.bf16.msra.mxu0 %v376
          %442 = vmatprep.subr.bf16.mxu0 %v379
          %443 = vmatpush1.bf16.msra.mxu0 %v378
          %444 = vmatprep.subr.bf16.mxu0 %v381
          %445 = vmatpush1.bf16.msra.mxu0 %v380
          %446 = vmatprep.subr.bf16.mxu0 %v383
          %447 = vmatpush1.bf16.msra.mxu0 %v382
          %448 = vmatprep.subr.bf16.mxu0 %v385
          %449 = vmatpush1.bf16.msra.mxu0 %v384
          %450 = vmatprep.subr.bf16.mxu0 %v387
          %451 = vmatpush1.bf16.msra.mxu0 %v386
          %452 = vmatprep.subr.bf16.mxu0 %v389
          %453 = vmatpush1.bf16.msra.mxu0 %v388
          %454 = vmatprep.subr.bf16.mxu0 %v391
          %455 = vmatpush1.bf16.msra.mxu0 %v390
          %456 = vmatprep.subr.bf16.mxu0 %v393
          %457 = vmatpush1.bf16.msra.mxu0 %v392
          %458 = vmatprep.subr.bf16.mxu0 %v395
          %459 = vmatpush1.bf16.msra.mxu0 %v394
          %460 = vmatprep.mubr.bf16.mxu0 1065369472
          %461 = vmatmul.mubr.bf16.gmra.mrb[0].mxu0 1065369472
          %v462 = vpop.f32.mrb[0].mxu0
          %v463 = vadd.f32 0.0, %v462
          %v464 = vpop.f32.mrb[0].mxu0
          %v465 = vadd.f32 0.0, %v464
          %v466 = vpop.f32.mrb[0].mxu0
          %v467 = vpop.f32.mrb[0].mxu0
          %468 = vdwg.mxu0
          %v469 = vmax.f32 %v463, 1e-12
          %v470 = vmax.f32 %v465, 1e-12
          %v471 = vrsqrt.pop %v469
          %v472 = vrsqrt.pop %v470
          %v475 = vcombine.low %v471, %v472
          %v477 = vunpack.c.l.s4 1966171168
          %v478 = vunpack.c.0.s8 %v477
          %v479 = vlaneseq
          %v480 = vshrl.u32 %v479, 7
          %v481 = vsub.s32 %v478, %v480
          %v482 = vrot.slane %v475, %v481
          %v484 = vunpack.c.l.s4 1966171168
          %v485 = vunpack.c.0.s8 %v484
          %v486 = vlaneseq
          %v487 = vshrl.u32 %v486, 7
          %v488 = vsub.s32 %v485, %v487
          %v489 = vrot.slane %v482, %v488
          %v491 = vlaneseq
          %vm492 = vcmp.ge.s32.totalorder %v491, 0
          %vm493 = vcmp.lt.s32.totalorder %v491, 256
          %vm494 = vmand %vm492, %vm493
          %495 = vst.msk [vmem:[#allocation2] sm:$0x3] %vm494, %v489
        $region40: #{tpu_custom_call.1} parent=27 // pred_fallthru
          _
        %v496 = vld [vmem:[#allocation3] sm:$0xff]
        %v497 = vld [vmem:[#allocation3 + $0x8] sm:$0xff]
        %v498 = vpack.c.bf16 %v496, %v496
        %v499 = vpack.c.bf16 %v497, %v497
        %v532 = vunpack.c.l.b16 %v200
        %v533 = vunpack.c.h.b16 %v200
        %v534 = vunpack.c.l.b16 %v201
        %v535 = vunpack.c.h.b16 %v201
        %v536 = vunpack.c.l.b16 %v202
        %v537 = vunpack.c.h.b16 %v202
        %v538 = vunpack.c.l.b16 %v203
        %v539 = vunpack.c.h.b16 %v203
        %v540 = vunpack.c.l.b16 %v204
        %v541 = vunpack.c.h.b16 %v204
        %v542 = vunpack.c.l.b16 %v205
        %v543 = vunpack.c.h.b16 %v205
        %v544 = vunpack.c.l.b16 %v206
        %v545 = vunpack.c.h.b16 %v206
        %v546 = vunpack.c.l.b16 %v207
        %v547 = vunpack.c.h.b16 %v207
        %v548 = vunpack.c.l.b16 %v208
        %v549 = vunpack.c.h.b16 %v208
        %v550 = vunpack.c.l.b16 %v209
        %v551 = vunpack.c.h.b16 %v209
        %v552 = vunpack.c.l.b16 %v210
        %v553 = vunpack.c.h.b16 %v210
        %v554 = vunpack.c.l.b16 %v211
        %v555 = vunpack.c.h.b16 %v211
        %v556 = vunpack.c.l.b16 %v212
        %v557 = vunpack.c.h.b16 %v212
        %v558 = vunpack.c.l.b16 %v213
        %v559 = vunpack.c.h.b16 %v213
        %v560 = vunpack.c.l.b16 %v214
        %v561 = vunpack.c.h.b16 %v214
        %v562 = vunpack.c.l.b16 %v215
        %v563 = vunpack.c.h.b16 %v215
        %v564 = vunpack.c.l.b16 %v216
        %v565 = vunpack.c.h.b16 %v216
        %v566 = vunpack.c.l.b16 %v217
        %v567 = vunpack.c.h.b16 %v217
        %v568 = vunpack.c.l.b16 %v218
        %v569 = vunpack.c.h.b16 %v218
        %v570 = vunpack.c.l.b16 %v219
        %v571 = vunpack.c.h.b16 %v219
        %v572 = vunpack.c.l.b16 %v220
        %v573 = vunpack.c.h.b16 %v220
        %v574 = vunpack.c.l.b16 %v221
        %v575 = vunpack.c.h.b16 %v221
        %v576 = vunpack.c.l.b16 %v222
        %v577 = vunpack.c.h.b16 %v222
        %v578 = vunpack.c.l.b16 %v223
        %v579 = vunpack.c.h.b16 %v223
        %v580 = vunpack.c.l.b16 %v224
        %v581 = vunpack.c.h.b16 %v224
        %v582 = vunpack.c.l.b16 %v225
        %v583 = vunpack.c.h.b16 %v225
        %v584 = vunpack.c.l.b16 %v226
        %v585 = vunpack.c.h.b16 %v226
        %v586 = vunpack.c.l.b16 %v227
        %v587 = vunpack.c.h.b16 %v227
        %v588 = vunpack.c.l.b16 %v228
        %v589 = vunpack.c.h.b16 %v228
        %v590 = vunpack.c.l.b16 %v229
        %v591 = vunpack.c.h.b16 %v229
        %v592 = vunpack.c.l.b16 %v230
        %v593 = vunpack.c.h.b16 %v230
        %v594 = vunpack.c.l.b16 %v231
        %v595 = vunpack.c.h.b16 %v231
        %v596 = vpack.c.b16 %v534, %v532
        %v597 = vpack.c.b16 %v535, %v533
        %v598 = vpack.c.b16 %v538, %v536
        %v599 = vpack.c.b16 %v539, %v537
        %v600 = vpack.c.b16 %v542, %v540
        %v601 = vpack.c.b16 %v543, %v541
        %v602 = vpack.c.b16 %v546, %v544
        %v603 = vpack.c.b16 %v547, %v545
        %v604 = vpack.c.b16 %v550, %v548
        %v605 = vpack.c.b16 %v551, %v549
        %v606 = vpack.c.b16 %v554, %v552
        %v607 = vpack.c.b16 %v555, %v553
        %v608 = vpack.c.b16 %v558, %v556
        %v609 = vpack.c.b16 %v559, %v557
        %v610 = vpack.c.b16 %v562, %v560
        %v611 = vpack.c.b16 %v563, %v561
        %v612 = vpack.c.b16 %v566, %v564
        %v613 = vpack.c.b16 %v567, %v565
        %v614 = vpack.c.b16 %v570, %v568
        %v615 = vpack.c.b16 %v571, %v569
        %v616 = vpack.c.b16 %v574, %v572
        %v617 = vpack.c.b16 %v575, %v573
        %v618 = vpack.c.b16 %v578, %v576
        %v619 = vpack.c.b16 %v579, %v577
        %v620 = vpack.c.b16 %v582, %v580
        %v621 = vpack.c.b16 %v583, %v581
        %v622 = vpack.c.b16 %v586, %v584
        %v623 = vpack.c.b16 %v587, %v585
        %v624 = vpack.c.b16 %v590, %v588
        %v625 = vpack.c.b16 %v591, %v589
        %v626 = vpack.c.b16 %v594, %v592
        %v627 = vpack.c.b16 %v595, %v593
        %660 = vmatprep.subr.bf16.mxu0 %v597
        %661 = vmatpush1.bf16.msra.mxu0 %v596
        %662 = vmatprep.subr.bf16.mxu0 %v599
        %663 = vmatpush1.bf16.msra.mxu0 %v598
        %664 = vmatprep.subr.bf16.mxu0 %v601
        %665 = vmatpush1.bf16.msra.mxu0 %v600
        %666 = vmatprep.subr.bf16.mxu0 %v603
        %667 = vmatpush1.bf16.msra.mxu0 %v602
        %668 = vmatprep.subr.bf16.mxu0 %v605
        %669 = vmatpush1.bf16.msra.mxu0 %v604
        %670 = vmatprep.subr.bf16.mxu0 %v607
        %671 = vmatpush1.bf16.msra.mxu0 %v606
        %672 = vmatprep.subr.bf16.mxu0 %v609
        %673 = vmatpush1.bf16.msra.mxu0 %v608
        %674 = vmatprep.subr.bf16.mxu0 %v611
        %675 = vmatpush1.bf16.msra.mxu0 %v610
        %676 = vmatprep.subr.bf16.mxu0 %v613
        %677 = vmatpush1.bf16.msra.mxu0 %v612
        %678 = vmatprep.subr.bf16.mxu0 %v615
        %679 = vmatpush1.bf16.msra.mxu0 %v614
        %680 = vmatprep.subr.bf16.mxu0 %v617
        %681 = vmatpush1.bf16.msra.mxu0 %v616
        %682 = vmatprep.subr.bf16.mxu0 %v619
        %683 = vmatpush1.bf16.msra.mxu0 %v618
        %684 = vmatprep.subr.bf16.mxu0 %v621
        %685 = vmatpush1.bf16.msra.mxu0 %v620
        %686 = vmatprep.subr.bf16.mxu0 %v623
        %687 = vmatpush1.bf16.msra.mxu0 %v622
        %688 = vmatprep.subr.bf16.mxu0 %v625
        %689 = vmatpush1.bf16.msra.mxu0 %v624
        %690 = vmatprep.subr.bf16.mxu0 %v627
        %691 = vmatpush1.bf16.msra.mxu0 %v626
        %692 = vmatprep.mubr.bf16.mxu0 %v499
        %693 = vmatmul.mubr.bf16.gmra.mrb[0].mxu0 %v498
        %v694 = vpop.f32.mrb[0].mxu0
        %v695 = vadd.f32 0.0, %v694
        %v696 = vpop.f32.mrb[0].mxu0
        %v697 = vadd.f32 0.0, %v696
        %v698 = vpop.f32.mrb[0].mxu0
        %v699 = vpop.f32.mrb[0].mxu0
        %700 = vdwg.mxu0
        %v701 = vld [vmem:[#allocation2] sm:$0x3]
        %v703 = vlaneseq
        %v704 = vshrl.u32 %v703, 7
        %v705 = vsub.s32 0, %v704
        %v706 = vrot.slane %v701, %v705
        %v707 = vlaneseq
        %v708 = vshrl.u32 %v707, 7
        %v709 = vsub.s32 1, %v708
        %v710 = vrot.slane %v701, %v709
        %v713 = vmul.f32 %v695, %v706
        %v714 = vmul.f32 %v697, %v710
        %v715 = vmax.f32 %v713, -1.0
        %v716 = vmax.f32 %v714, -1.0
        %v717 = vmin.f32 %v715, 1.0
        %v718 = vmin.f32 %v716, 1.0
        %v719 = vmul.f32 %v717, 16.0
        %v720 = vmul.f32 %v718, 16.0
        %721 = vst [vmem:[%s196] sm:$0xff] %v719
        %722 = vst [vmem:[%s196 + $0x8] sm:$0xff] %v720
        %s723 = sand.u32 %s94, 1
        %s724 = scalar_lea.sflag [#allocation5], %s723
        %s725 = sand.u32 %s94, 1
        %s726 = smul.addr %s725, 16
        %s727 = scalar_lea.vmem [#allocation8], %s726
        // Predicated region
        $region41: #{tpu_custom_call.1} parent=27 // pred_check
          %p728 = pneg %p104
        $region42: #{tpu_custom_call.1} parent=27 // pred_check_branch
          %730 = sbr.rel (%p728) target = $region44
        $region43: #{tpu_custom_call.1} parent=27 // pred_region
          %s731 = smul.u32 2, %s24
          %s733 = ssub.s32 256, 256
          %734 = vsyncadd %s724, %s733
          %s735 = smul.addr %s25, 4
          %s736 = sadd.s32 %s731, %s735
          %s737 = smul.addr %s736, 128
          %s738 = scalar_lea.hbm %s2, %s737
          %s740 = sshll.u32 %s727, 4
          %s741 = int_to_ptr.vmem [resolvable:$true] %s740
          %743 = dma.vmem_to_hbm [thread:$0]  %s741, 256, %s738, %s724
        $region44: #{tpu_custom_call.1} parent=27 // pred_fallthru
          _
      $region28: #{tpu_custom_call.1} parent=5 // pred_fallthru
        _
      %p744 = scmp.le.s32.totalorder 2, %s15
      // Predicated region
      $region45: #{tpu_custom_call.1} parent=5 // pred_check
        %p745 = pneg %p744
      $region46: #{tpu_custom_call.1} parent=5 // pred_check_branch
        %747 = sbr.rel (%p745) target = $region48
      $region47: #{tpu_custom_call.1} parent=5 // pred_region
        %s748 = ssub.s32 %s15, 2
        // Predicated region
        $region49: #{tpu_custom_call.1} parent=47 // pred_check
          %p749 = pneg %p110
        $region50: #{tpu_custom_call.1} parent=47 // pred_check_branch
          %751 = sbr.rel (%p749) target = $region52
        $region51: #{tpu_custom_call.1} parent=47 // pred_region
          %s752 = sand.u32 %s95, 1
          %s753 = scalar_lea.sflag [#allocation5], %s752
          %s754 = sand.u32 %s95, 1
          %s755 = smul.addr %s754, 16
          %s756 = scalar_lea.vmem [#allocation8], %s755
          %757 = dma.done %s753, 256
        $region52: #{tpu_custom_call.1} parent=47 // pred_fallthru
          _
      $region48: #{tpu_custom_call.1} parent=5 // pred_fallthru
        _
    $region6: #{tpu_custom_call.1} parent=1 // loop_footer
      %s19 = sadd.s32 1, %s15
    $region7: #{tpu_custom_call.1} parent=1 // loop_footer_branch
      %14 = sbr.rel target = $region3
    $region8: #{tpu_custom_call.1} parent=1 // loop_exit
      _
    %758 = vsyncpa [#allocation4], 1
    %s759 = scalar_lea.sflag [#allocation4], 1
    %760 = vsyncpa %s759, 1
    %761 = vsyncpa [#allocation7], 1
    %s762 = scalar_lea.sflag [#allocation7], 1
    %763 = vsyncpa %s762, 1
    %764 = vsyncpa [#allocation5], 1
    %s765 = scalar_lea.sflag [#allocation5], 1
    %766 = vsyncpa %s765, 1

</llo_original>
